<compile_context>
chip_gen: v5e
topology: v5e:2x2
jax: 0.10.0
libtpu: 0.0.40
codegen_flags: <defaults>
</compile_context>

<pallas_src>
import jax
import jax.numpy as jnp
from jax.experimental import pallas as pl
from jax.experimental.pallas import tpu as pltpu


# --------------------------------------------------------------------------- #
# Kernel
# --------------------------------------------------------------------------- #
def _voters_kernel(x_ref, w_ref, b_ref, o_ref):
    """One batch tile: (tb, D) @ (D, V*C) + bias(1, V*C) -> (tb, V*C).

    x arrives in its HBM dtype (f32) and is cast to the weight compute dtype
    in-register; accumulation is f32 on the MXU; bias add / store stay f32.
    """
    x = x_ref[...].astype(w_ref.dtype)                  # in-register cast (cheap VPU)
    out = jnp.dot(x, w_ref[...], preferred_element_type=jnp.float32)
    o_ref[...] = (out + b_ref[...]).astype(o_ref.dtype)  # row-broadcast bias add


# --------------------------------------------------------------------------- #
# Tiling / VMEM budgeting helpers
# --------------------------------------------------------------------------- #
def _vmem_budget_bytes():
    """~Half the chip's physical VMEM (generation-aware), conservative fallback."""
    try:
        info = pltpu.get_tpu_info()
        cap = getattr(info, "vmem_capacity_bytes", None)
        if cap:
            return int(cap) // 2
    except Exception:
        pass
    return 32 * 1024 * 1024  # safe working-set budget on v5e / v6e / v7x


def _pick_batch_tile(B, block_b):
    """Aim for >= 8 grid steps (2 v7x TCs x a few pipelined steps) when B allows."""
    tb = ((B // 8) // 8) * 8          # ~B/8 rows per step, 8-row (sublane) aligned
    tb = min(block_b, tb)
    return max(8, tb)


def _fit_tb_to_vmem(tb, D, VC, x_bytes, w_bytes, out_bytes, budget):
    """Shrink the batch tile (never the lane-dense V*C axis) to fit the budget."""
    def need(t):
        return (2 * t * D * x_bytes        # x tile, double-buffered
                + 2 * D * VC * w_bytes     # resident weights (conservative: 2 bufs)
                + 2 * VC * 4               # resident bias (f32)
                + 2 * t * VC * out_bytes)  # out tile, double-buffered
    while tb > 8 and need(tb) > budget:
        tb = max(8, ((tb // 2) // 8) * 8)
    return tb


# --------------------------------------------------------------------------- #
# pallas_call wrapper
# --------------------------------------------------------------------------- #
def _call_voters(x, w2, b2, tb, out_dtype, vmem_limit, single_buffer_resident):
    B, D = x.shape
    VC = w2.shape[1]
    n_blocks = pl.cdiv(B, tb)

    if single_buffer_resident:
        # Constant index_map => the block never changes; 1 buffer is enough.
        w_spec = pl.BlockSpec((D, VC), lambda i: (0, 0), pipeline_mode=pl.Buffered(1))
        b_spec = pl.BlockSpec((1, VC), lambda i: (0, 0), pipeline_mode=pl.Buffered(1))
    else:
        w_spec = pl.BlockSpec((D, VC), lambda i: (0, 0))
        b_spec = pl.BlockSpec((1, VC), lambda i: (0, 0))

    return pl.pallas_call(
        _voters_kernel,
        out_shape=jax.ShapeDtypeStruct((B, VC), out_dtype),
        grid=(n_blocks,),
        in_specs=[
            pl.BlockSpec((tb, D), lambda i: (i, 0)),   # x tile marches over batch
            w_spec,                                    # W resident across grid
            b_spec,                                    # bias resident across grid
        ],
        out_specs=pl.BlockSpec((tb, VC), lambda i: (i, 0)),
        compiler_params=pltpu.CompilerParams(
            dimension_semantics=("parallel",),          # megacore-shard batch (v7x)
            vmem_limit_bytes=int(vmem_limit),
        ),
    )(x, w2, b2)


def majority_vote_forward(x, w2, b2, num_voters, num_classes, *,
                          block_b=1024, out_dtype=jnp.float32):
    """Forward pass.

    x  : (B, D) activations (any float dtype; cast to w2.dtype inside the kernel)
    w2 : (D, V*C) flattened voter weights, already in the compute dtype
    b2 : (1, V*C) flattened voter biases (f32)
    returns (B, V, C) `out_dtype`, matching torch's `self.voters(x)` layout.
    """
    B, D = x.shape
    D2, VC = w2.shape
    assert D == D2 and VC == num_voters * num_classes and b2.shape == (1, VC)

    budget = _vmem_budget_bytes()
    tb = _pick_batch_tile(B, block_b)
    tb = _fit_tb_to_vmem(tb, D, VC,
                         jnp.dtype(x.dtype).itemsize,
                         jnp.dtype(w2.dtype).itemsize,
                         jnp.dtype(out_dtype).itemsize,
                         budget)

    try:
        out2d = _call_voters(x, w2, b2, tb, out_dtype, budget,
                             single_buffer_resident=True)
    except Exception:
        # Fallback if this toolchain rejects Buffered(1) on pallas_call inputs.
        out2d = _call_voters(x, w2, b2, tb, out_dtype, budget,
                             single_buffer_resident=False)

    # Ragged last batch block is clipped by Pallas; out2d is already (B, VC).
    return out2d.reshape(B, num_voters, num_classes)


# --------------------------------------------------------------------------- #
# Module mirror
# --------------------------------------------------------------------------- #
class MajorityVoteJAX:
    """Minimal JAX mirror of the PyTorch MajorityVote module (forward only)."""

    def __init__(self, voter_params, prior, mc_draws=10, distr='dirichlet',
                 kl_factor=1.0, key=None, compute_dtype=jnp.bfloat16,
                 out_dtype=jnp.float32):
        if distr not in ['dirichlet', 'categorical']:
            raise NotImplementedError
        # Construction-time only check (one device sync, off the hot path).
        assert bool(jnp.all(prior > 0)), 'all prior parameters must be positive'
        self.num_voters = int(prior.shape[0])
        self.prior = prior
        self.mc_draws = mc_draws
        self.distr_type = distr
        self.kl_factor = kl_factor
        self.compute_dtype = compute_dtype
        self.out_dtype = out_dtype

        w, b = voter_params                               # (V, D, C), (V, C)
        V, D, C = w.shape
        assert V == self.num_voters and b.shape == (V, C)
        self.num_classes = C
        self.feat_dim = D
        # Store weights ONCE: MXU-friendly (D, V*C) layout, pre-cast to bf16.
        self.w2 = jnp.transpose(w, (1, 0, 2)).reshape(D, V * C).astype(compute_dtype)
        self.b2 = b.reshape(1, V * C).astype(jnp.float32)

        # Analogue of `post = torch.rand(V) * 2 + 1e-9; log(post)` (unused in forward).
        key = jax.random.PRNGKey(0) if key is None else key
        post = jax.random.uniform(key, (self.num_voters,), jnp.float32) * 2.0 + 1e-9
        self.post = jnp.log(post)

    def __call__(self, x):
        return majority_vote_forward(
            x, self.w2, self.b2, self.num_voters, self.num_classes,
            out_dtype=self.out_dtype)

    def get_post(self):
        return jnp.exp(self.post)


# --------------------------------------------------------------------------- #
# Reference + self-test
# --------------------------------------------------------------------------- #
def _reference_forward(x, w, bias, compute_dtype=jnp.bfloat16):
    """Pure-JAX reference with the same bf16 input rounding / f32 accumulation."""
    xb = x.astype(compute_dtype).astype(jnp.float32)
    wb = w.astype(compute_dtype).astype(jnp.float32)
    return jnp.einsum('bd,vdc->bvc', xb, wb) + bias[None, :, :].astype(jnp.float32)


if __name__ == "__main__":
    key = jax.random.PRNGKey(0)
    k_x, k_w, k_b, k_post = jax.random.split(key, 4)

    # batch, features, num_voters, num_classes  (V*C = 128 -> lane-dense output)
    B, D, V, C = 8, 32, 16, 8

    x = jax.random.normal(k_x, (B, D), jnp.float32)
    voter_w = jax.random.normal(k_w, (V, D, C), jnp.float32) * 0.1
    voter_b = jax.random.normal(k_b, (V, C), jnp.float32) * 0.01
    prior = jnp.ones((V,), jnp.float32)

    model = MajorityVoteJAX((voter_w, voter_b), prior, mc_draws=10,
                            distr='dirichlet', kl_factor=1.0, key=k_post)

    out = model(x)
    out = jax.block_until_ready(out)

    ref = _reference_forward(x, voter_w, voter_b)
    assert out.shape == (B, V, C), out.shape
    assert jnp.allclose(out, ref, atol=1e-3, rtol=1e-3), \
        float(jnp.max(jnp.abs(out - ref)))

    print("KERNEL_OK")
</pallas_src>

<mosaic_0001>
module attributes {stable_mosaic.version = 11 : i64} {
  func.func @_voters_kernel(%arg0: i32, %arg1: memref<8x32xf32, #tpu.memory_space<vmem>>, %arg2: memref<32x128xbf16, #tpu.memory_space<vmem>>, %arg3: memref<1x128xf32, #tpu.memory_space<vmem>>, %arg4: memref<8x128xf32, #tpu.memory_space<vmem>>) attributes {dimension_semantics = [#tpu.dimension_semantics<parallel>], iteration_bounds = array<i64: 1>, scalar_prefetch = 0 : i64, scratch_operands = 0 : i64, tpu.core_type = #tpu.core_type<tc>, window_params = [{transform_indices = @transform_0, window_bounds = array<i64: 8, 32>}, {pipeline_mode = #tpu.pipeline_mode<synchronous>, transform_indices = @transform_1, window_bounds = array<i64: 32, 128>}, {pipeline_mode = #tpu.pipeline_mode<synchronous>, transform_indices = @transform_2, window_bounds = array<i64: 1, 128>}, {transform_indices = @transform_3, window_bounds = array<i64: 8, 128>}]} {
    %c0 = arith.constant 0 : index
    %c0_0 = arith.constant 0 : index
    %0 = vector.load %arg1[%c0, %c0_0] : memref<8x32xf32, #tpu.memory_space<vmem>>, vector<8x32xf32>
    %1 = arith.truncf %0 : vector<8x32xf32> to vector<8x32xbf16>
    %c0_1 = arith.constant 0 : index
    %c0_2 = arith.constant 0 : index
    %2 = vector.load %arg2[%c0_1, %c0_2] : memref<32x128xbf16, #tpu.memory_space<vmem>>, vector<32x128xbf16>
    %cst = arith.constant dense<0.000000e+00> : vector<8x128xf32>
    %3 = tpu.matmul %1, %2, %cst {dimension_numbers = #tpu.dot_dimension_numbers<[1], [0], [0], [1], [0, 0, 1, 1], [], []>} : vector<8x32xbf16>, vector<32x128xbf16>, vector<8x128xf32> -> vector<8x128xf32>
    %c0_3 = arith.constant 0 : index
    %c0_4 = arith.constant 0 : index
    %4 = vector.load %arg3[%c0_3, %c0_4] : memref<1x128xf32, #tpu.memory_space<vmem>>, vector<1x128xf32>
    %5 = vector.broadcast %4 : vector<1x128xf32> to vector<8x128xf32>
    %6 = arith.addf %3, %5 : vector<8x128xf32>
    %c0_5 = arith.constant 0 : index
    %c0_6 = arith.constant 0 : index
    %7 = vector.load %arg4[%c0_5, %c0_6] : memref<8x128xf32, #tpu.memory_space<vmem>>, vector<8x128xf32>
    tpu.vector_store %arg4[%c0_5, %c0_6], %6 {strides = array<i32>} : memref<8x128xf32, #tpu.memory_space<vmem>>, vector<8x128xf32>,
    return
  }
  func.func @transform_0(%arg0: i32) -> (i32, i32) {
    %c0_i32 = arith.constant 0 : i32
    %c0_i32_0 = arith.constant 0 : i32
    return %arg0, %c0_i32 : i32, i32
  }
  func.func @transform_1(%arg0: i32) -> (i32, i32) {
    %c0_i32 = arith.constant 0 : i32
    %c0_i32_0 = arith.constant 0 : i32
    %c0_i32_1 = arith.constant 0 : i32
    return %c0_i32, %c0_i32_0 : i32, i32
  }
  func.func @transform_2(%arg0: i32) -> (i32, i32) {
    %c0_i32 = arith.constant 0 : i32
    %c0_i32_0 = arith.constant 0 : i32
    %c0_i32_1 = arith.constant 0 : i32
    return %c0_i32, %c0_i32_0 : i32, i32
  }
  func.func @transform_3(%arg0: i32) -> (i32, i32) {
    %c0_i32 = arith.constant 0 : i32
    %c0_i32_0 = arith.constant 0 : i32
    return %arg0, %c0_i32 : i32, i32
  }
}

module attributes {stable_mosaic.version = 11 : i64} {
  func.func @_voters_kernel(%arg0: i32, %arg1: memref<8x32xf32, #tpu.memory_space<vmem>>, %arg2: memref<32x128xbf16, #tpu.memory_space<vmem>>, %arg3: memref<1x128xf32, #tpu.memory_space<vmem>>, %arg4: memref<8x128xf32, #tpu.memory_space<vmem>>) attributes {dimension_semantics = [#tpu.dimension_semantics<parallel>], iteration_bounds = array<i64: 1>, scalar_prefetch = 0 : i64, scratch_operands = 0 : i64, tpu.core_type = #tpu.core_type<tc>, window_params = [{transform_indices = @transform_0, window_bounds = array<i64: 8, 32>}, {pipeline_mode = #tpu.pipeline_mode<synchronous>, transform_indices = @transform_1, window_bounds = array<i64: 32, 128>}, {pipeline_mode = #tpu.pipeline_mode<synchronous>, transform_indices = @transform_2, window_bounds = array<i64: 1, 128>}, {transform_indices = @transform_3, window_bounds = array<i64: 8, 128>}]} {
    %c0 = arith.constant 0 : index
    %c0_0 = arith.constant 0 : index
    %0 = vector.load %arg1[%c0, %c0_0] : memref<8x32xf32, #tpu.memory_space<vmem>>, vector<8x32xf32>
    %1 = arith.truncf %0 : vector<8x32xf32> to vector<8x32xbf16>
    %c0_1 = arith.constant 0 : index
    %c0_2 = arith.constant 0 : index
    %2 = vector.load %arg2[%c0_1, %c0_2] : memref<32x128xbf16, #tpu.memory_space<vmem>>, vector<32x128xbf16>
    %cst = arith.constant dense<0.000000e+00> : vector<8x128xf32>
    %3 = tpu.matmul %1, %2, %cst {dimension_numbers = #tpu.dot_dimension_numbers<[1], [0], [0], [1], [0, 0, 1, 1], [], []>} : vector<8x32xbf16>, vector<32x128xbf16>, vector<8x128xf32> -> vector<8x128xf32>
    %c0_3 = arith.constant 0 : index
    %c0_4 = arith.constant 0 : index
    %4 = vector.load %arg3[%c0_3, %c0_4] : memref<1x128xf32, #tpu.memory_space<vmem>>, vector<1x128xf32>
    %5 = vector.broadcast %4 : vector<1x128xf32> to vector<8x128xf32>
    %6 = arith.addf %3, %5 : vector<8x128xf32>
    %c0_5 = arith.constant 0 : index
    %c0_6 = arith.constant 0 : index
    %7 = vector.load %arg4[%c0_5, %c0_6] : memref<8x128xf32, #tpu.memory_space<vmem>>, vector<8x128xf32>
    tpu.vector_store %arg4[%c0_5, %c0_6], %6 {strides = array<i32>} : memref<8x128xf32, #tpu.memory_space<vmem>>, vector<8x128xf32>,
    return
  }
  func.func @transform_0(%arg0: i32) -> (i32, i32) {
    %c0_i32 = arith.constant 0 : i32
    %c0_i32_0 = arith.constant 0 : i32
    return %arg0, %c0_i32 : i32, i32
  }
  func.func @transform_1(%arg0: i32) -> (i32, i32) {
    %c0_i32 = arith.constant 0 : i32
    %c0_i32_0 = arith.constant 0 : i32
    %c0_i32_1 = arith.constant 0 : i32
    return %c0_i32, %c0_i32_0 : i32, i32
  }
  func.func @transform_2(%arg0: i32) -> (i32, i32) {
    %c0_i32 = arith.constant 0 : i32
    %c0_i32_0 = arith.constant 0 : i32
    %c0_i32_1 = arith.constant 0 : i32
    return %c0_i32, %c0_i32_0 : i32, i32
  }
  func.func @transform_3(%arg0: i32) -> (i32, i32) {
    %c0_i32 = arith.constant 0 : i32
    %c0_i32_0 = arith.constant 0 : i32
    return %arg0, %c0_i32 : i32, i32
  }
}

</mosaic_0001>

<llo_original>
// kernel: tpu_custom_call.1
$region0: #{tpu_custom_call.1}
  #allocation0 [shape = 'u32[]', space=smem, size = 0x4, offset = 0x4, fixed_abs, tag = 'smem constant byte address 0x4 - core index']
  #allocation1 [shape = 'u32[72,128]{1,0:T(1,128)}', space=vmem, size = 0x9000, scoped, tag = 'internal scratch']
  %s0 = inlined_call_operand.hbm [shape: f32[8,32], index: 0, kind: input, shape index: {}]
  %s1 = inlined_call_operand.hbm [shape: bf16[32,128], index: 1, kind: input, shape index: {}]
  %s2 = inlined_call_operand.vmem [shape: f32[1,128], index: 2, kind: input, shape index: {}]
  %s3 = inlined_call_operand.hbm [shape: f32[8,128], index: 3, kind: output, shape index: {}]
  %s4 = sld [smem:[#allocation0]]
  $region30: #{tpu_custom_call.1} parent=0
    _
  %s6 = ssub.s32 1, %s4
  %s7 = scalar_select 0, %s6, %s4
  $region1: #{tpu_custom_call.1} parent=0
    #allocation2 [shape = 'u8[4096]{0}', space=vmem, size = 0x1000, scoped, tag = 'input window, operand 0, single buffered']
    #allocation3 [shape = 's32[1]{0}', space=sflag, size = 0x4, scoped, tag = 'scoped memory for tpu_custom_call.1']
    #allocation4 [shape = 's32[1]{0}', space=sflag, size = 0x4, scoped, tag = 'scoped memory for tpu_custom_call.1']
    #allocation5 [shape = 'u8[8192]{0}', space=vmem, size = 0x2000, scoped, tag = 'input window, operand 1, single buffered']
    #allocation6 [shape = 's32[1]{0}', space=sflag, size = 0x4, scoped, tag = 'scoped memory for tpu_custom_call.1']
    #allocation7 [shape = 'u8[4096]{0}', space=vmem, size = 0x1000, scoped, tag = 'output window, operand 0, single buffered']
    %8 = vsyncpa [#allocation3], 0
    %9 = vsyncpa [#allocation6], 0
    %10 = vsyncpa [#allocation4], 0
    // Predicated region
    $region2: #{tpu_custom_call.1} parent=1 // pred_check
      _
    $region3: #{tpu_custom_call.1} parent=1 // pred_check_branch
      %12 = sbr.rel (0) target = $region5
    $region4: #{tpu_custom_call.1} parent=1 // pred_region
      %14 = vsyncadd [#allocation3], 0
      %s16 = sshll.u32 %s0, 4
      %s17 = int_to_ptr.hbm [resolvable:$true] %s16
      %s18 = sshll.u32 [#allocation2], 4
      %s19 = int_to_ptr.vmem [resolvable:$true] %s18
      %21 = dma.hbm_to_vmem [thread:$0]  %s17, 128, %s19, [#allocation3]
    $region5: #{tpu_custom_call.1} parent=1 // pred_fallthru
      _
    // Predicated region
    $region6: #{tpu_custom_call.1} parent=1 // pred_check
      _
    $region7: #{tpu_custom_call.1} parent=1 // pred_check_branch
      %23 = sbr.rel (0) target = $region9
    $region8: #{tpu_custom_call.1} parent=1 // pred_region
      %25 = vsyncadd [#allocation6], 0
      %s26 = sshll.u32 %s1, 4
      %s27 = int_to_ptr.hbm [resolvable:$true] %s26
      %s28 = sshll.u32 [#allocation5], 4
      %s29 = int_to_ptr.vmem [resolvable:$true] %s28
      %34 = dma.hbm_to_vmem [thread:$0]  %s27, 256, %s29, [#allocation6], 64, 64, 4
    $region9: #{tpu_custom_call.1} parent=1 // pred_fallthru
      _
    // Predicated region
    $region10: #{tpu_custom_call.1} parent=1 // pred_check
      _
    $region11: #{tpu_custom_call.1} parent=1 // pred_check_branch
      %36 = sbr.rel (0) target = $region13
    $region12: #{tpu_custom_call.1} parent=1 // pred_region
      _
    $region13: #{tpu_custom_call.1} parent=1 // pred_fallthru
      _
    // Predicated region
    $region14: #{tpu_custom_call.1} parent=1 // pred_check
      _
    $region15: #{tpu_custom_call.1} parent=1 // pred_check_branch
      %38 = sbr.rel (0) target = $region17
    $region16: #{tpu_custom_call.1} parent=1 // pred_region
      %40 = dma.done [#allocation3], 128
    $region17: #{tpu_custom_call.1} parent=1 // pred_fallthru
      _
    // Predicated region
    $region18: #{tpu_custom_call.1} parent=1 // pred_check
      _
    $region19: #{tpu_custom_call.1} parent=1 // pred_check_branch
      %42 = sbr.rel (0) target = $region21
    $region20: #{tpu_custom_call.1} parent=1 // pred_region
      %44 = dma.done [#allocation6], 256
    $region21: #{tpu_custom_call.1} parent=1 // pred_fallthru
      _
    %v46 = vld [vmem:[#allocation2] sm:$0xff]
    %v47 = vpack.c.bf16 %v46, %v46
    %v48 = vld [vmem:[#allocation5] sm:$0xf]
    %v49 = vld [vmem:[#allocation5 + $0x4] sm:$0xf]
    %v50 = vld [vmem:[#allocation5 + $0x8] sm:$0xf]
    %v51 = vld [vmem:[#allocation5 + $0xc] sm:$0xf]
    %v52 = vld [vmem:[%s2] sm:$0x1]
    %v54 = vperm.slane %v52, 0
    %v60 = vunpack.c.l.b16 %v48
    %v61 = vunpack.c.l.b16 %v49
    %v62 = vunpack.c.l.b16 %v50
    %v63 = vunpack.c.l.b16 %v51
    %v64 = vpack.c.b16 %v61, %v60
    %v65 = vpack.c.b16 %v63, %v62
    %vm68 = vcmask 261120
    %v70 = vsel %vm68, %v47, 0
    %72 = vmatpush.bf16.msra.mxu0 0
    %73 = vmatpush.bf16.msra.mxu0 0
    %74 = vmatpush.bf16.msra.mxu0 0
    %75 = vmatpush.bf16.msra.mxu0 0
    %76 = vmatpush.bf16.msra.mxu0 0
    %77 = vmatpush.bf16.msra.mxu0 0
    %78 = vmatpush.bf16.msra.mxu0 %v65
    %79 = vmatpush.bf16.msra.mxu0 %v64
    %80 = vmatmul.bf16.gmra.mxu0 %v70
    %v81 = vpop.f32.mrf.mxu0
    %v82 = vadd.f32 %v54, %v81
    %v83 = vpop.f32.mrf.mxu0
    %84 = vdwg.mxu0
    %85 = vst [vmem:[#allocation7] sm:$0xff] %v82
    // Predicated region
    $region22: #{tpu_custom_call.1} parent=1 // pred_check
      _
    $region23: #{tpu_custom_call.1} parent=1 // pred_check_branch
      %87 = sbr.rel (0) target = $region25
    $region24: #{tpu_custom_call.1} parent=1 // pred_region
      %89 = vsyncadd [#allocation4], 0
      %s91 = sshll.u32 [#allocation7], 4
      %s92 = int_to_ptr.vmem [resolvable:$true] %s91
      %s93 = sshll.u32 %s3, 4
      %s94 = int_to_ptr.hbm [resolvable:$true] %s93
      %96 = dma.vmem_to_hbm [thread:$0]  %s92, 128, %s94, [#allocation4]
    $region25: #{tpu_custom_call.1} parent=1 // pred_fallthru
      _
    // Predicated region
    $region26: #{tpu_custom_call.1} parent=1 // pred_check
      _
    $region27: #{tpu_custom_call.1} parent=1 // pred_check_branch
      %98 = sbr.rel (0) target = $region29
    $region28: #{tpu_custom_call.1} parent=1 // pred_region
      %100 = dma.done [#allocation4], 128
    $region29: #{tpu_custom_call.1} parent=1 // pred_fallthru
      _
    %101 = vsyncpa [#allocation3], 1
    %102 = vsyncpa [#allocation6], 1
    %103 = vsyncpa [#allocation4], 1

// kernel: tpu_custom_call.1
$region0: #{tpu_custom_call.1}
  #allocation0 [shape = 'u32[]', space=smem, size = 0x4, offset = 0x4, fixed_abs, tag = 'smem constant byte address 0x4 - core index']
  #allocation1 [shape = 'u32[72,128]{1,0:T(1,128)}', space=vmem, size = 0x9000, scoped, tag = 'internal scratch']
  %s0 = inlined_call_operand.hbm [shape: f32[8,32], index: 0, kind: input, shape index: {}]
  %s1 = inlined_call_operand.hbm [shape: bf16[32,128], index: 1, kind: input, shape index: {}]
  %s2 = inlined_call_operand.vmem [shape: f32[1,128], index: 2, kind: input, shape index: {}]
  %s3 = inlined_call_operand.hbm [shape: f32[8,128], index: 3, kind: output, shape index: {}]
  %s4 = sld [smem:[#allocation0]]
  $region30: #{tpu_custom_call.1} parent=0
    _
  %s6 = ssub.s32 1, %s4
  %s7 = scalar_select 0, %s6, %s4
  $region1: #{tpu_custom_call.1} parent=0
    #allocation2 [shape = 'u8[4096]{0}', space=vmem, size = 0x1000, scoped, tag = 'input window, operand 0, single buffered']
    #allocation3 [shape = 's32[1]{0}', space=sflag, size = 0x4, scoped, tag = 'scoped memory for tpu_custom_call.1']
    #allocation4 [shape = 's32[1]{0}', space=sflag, size = 0x4, scoped, tag = 'scoped memory for tpu_custom_call.1']
    #allocation5 [shape = 'u8[8192]{0}', space=vmem, size = 0x2000, scoped, tag = 'input window, operand 1, single buffered']
    #allocation6 [shape = 's32[1]{0}', space=sflag, size = 0x4, scoped, tag = 'scoped memory for tpu_custom_call.1']
    #allocation7 [shape = 'u8[4096]{0}', space=vmem, size = 0x1000, scoped, tag = 'output window, operand 0, single buffered']
    %8 = vsyncpa [#allocation3], 0
    %9 = vsyncpa [#allocation6], 0
    %10 = vsyncpa [#allocation4], 0
    // Predicated region
    $region2: #{tpu_custom_call.1} parent=1 // pred_check
      _
    $region3: #{tpu_custom_call.1} parent=1 // pred_check_branch
      %12 = sbr.rel (0) target = $region5
    $region4: #{tpu_custom_call.1} parent=1 // pred_region
      %14 = vsyncadd [#allocation3], 0
      %s16 = sshll.u32 %s0, 4
      %s17 = int_to_ptr.hbm [resolvable:$true] %s16
      %s18 = sshll.u32 [#allocation2], 4
      %s19 = int_to_ptr.vmem [resolvable:$true] %s18
      %21 = dma.hbm_to_vmem [thread:$0]  %s17, 128, %s19, [#allocation3]
    $region5: #{tpu_custom_call.1} parent=1 // pred_fallthru
      _
    // Predicated region
    $region6: #{tpu_custom_call.1} parent=1 // pred_check
      _
    $region7: #{tpu_custom_call.1} parent=1 // pred_check_branch
      %23 = sbr.rel (0) target = $region9
    $region8: #{tpu_custom_call.1} parent=1 // pred_region
      %25 = vsyncadd [#allocation6], 0
      %s26 = sshll.u32 %s1, 4
      %s27 = int_to_ptr.hbm [resolvable:$true] %s26
      %s28 = sshll.u32 [#allocation5], 4
      %s29 = int_to_ptr.vmem [resolvable:$true] %s28
      %34 = dma.hbm_to_vmem [thread:$0]  %s27, 256, %s29, [#allocation6], 64, 64, 4
    $region9: #{tpu_custom_call.1} parent=1 // pred_fallthru
      _
    // Predicated region
    $region10: #{tpu_custom_call.1} parent=1 // pred_check
      _
    $region11: #{tpu_custom_call.1} parent=1 // pred_check_branch
      %36 = sbr.rel (0) target = $region13
    $region12: #{tpu_custom_call.1} parent=1 // pred_region
      _
    $region13: #{tpu_custom_call.1} parent=1 // pred_fallthru
      _
    // Predicated region
    $region14: #{tpu_custom_call.1} parent=1 // pred_check
      _
    $region15: #{tpu_custom_call.1} parent=1 // pred_check_branch
      %38 = sbr.rel (0) target = $region17
    $region16: #{tpu_custom_call.1} parent=1 // pred_region
      %40 = dma.done [#allocation3], 128
    $region17: #{tpu_custom_call.1} parent=1 // pred_fallthru
      _
    // Predicated region
    $region18: #{tpu_custom_call.1} parent=1 // pred_check
      _
    $region19: #{tpu_custom_call.1} parent=1 // pred_check_branch
      %42 = sbr.rel (0) target = $region21
    $region20: #{tpu_custom_call.1} parent=1 // pred_region
      %44 = dma.done [#allocation6], 256
    $region21: #{tpu_custom_call.1} parent=1 // pred_fallthru
      _
    %v46 = vld [vmem:[#allocation2] sm:$0xff]
    %v47 = vpack.c.bf16 %v46, %v46
    %v48 = vld [vmem:[#allocation5] sm:$0xf]
    %v49 = vld [vmem:[#allocation5 + $0x4] sm:$0xf]
    %v50 = vld [vmem:[#allocation5 + $0x8] sm:$0xf]
    %v51 = vld [vmem:[#allocation5 + $0xc] sm:$0xf]
    %v52 = vld [vmem:[%s2] sm:$0x1]
    %v54 = vperm.slane %v52, 0
    %v60 = vunpack.c.l.b16 %v48
    %v61 = vunpack.c.l.b16 %v49
    %v62 = vunpack.c.l.b16 %v50
    %v63 = vunpack.c.l.b16 %v51
    %v64 = vpack.c.b16 %v61, %v60
    %v65 = vpack.c.b16 %v63, %v62
    %vm68 = vcmask 261120
    %v70 = vsel %vm68, %v47, 0
    %72 = vmatpush.bf16.msra.mxu0 0
    %73 = vmatpush.bf16.msra.mxu0 0
    %74 = vmatpush.bf16.msra.mxu0 0
    %75 = vmatpush.bf16.msra.mxu0 0
    %76 = vmatpush.bf16.msra.mxu0 0
    %77 = vmatpush.bf16.msra.mxu0 0
    %78 = vmatpush.bf16.msra.mxu0 %v65
    %79 = vmatpush.bf16.msra.mxu0 %v64
    %80 = vmatmul.bf16.gmra.mxu0 %v70
    %v81 = vpop.f32.mrf.mxu0
    %v82 = vadd.f32 %v54, %v81
    %v83 = vpop.f32.mrf.mxu0
    %84 = vdwg.mxu0
    %85 = vst [vmem:[#allocation7] sm:$0xff] %v82
    // Predicated region
    $region22: #{tpu_custom_call.1} parent=1 // pred_check
      _
    $region23: #{tpu_custom_call.1} parent=1 // pred_check_branch
      %87 = sbr.rel (0) target = $region25
    $region24: #{tpu_custom_call.1} parent=1 // pred_region
      %89 = vsyncadd [#allocation4], 0
      %s91 = sshll.u32 [#allocation7], 4
      %s92 = int_to_ptr.vmem [resolvable:$true] %s91
      %s93 = sshll.u32 %s3, 4
      %s94 = int_to_ptr.hbm [resolvable:$true] %s93
      %96 = dma.vmem_to_hbm [thread:$0]  %s92, 128, %s94, [#allocation4]
    $region25: #{tpu_custom_call.1} parent=1 // pred_fallthru
      _
    // Predicated region
    $region26: #{tpu_custom_call.1} parent=1 // pred_check
      _
    $region27: #{tpu_custom_call.1} parent=1 // pred_check_branch
      %98 = sbr.rel (0) target = $region29
    $region28: #{tpu_custom_call.1} parent=1 // pred_region
      %100 = dma.done [#allocation4], 128
    $region29: #{tpu_custom_call.1} parent=1 // pred_fallthru
      _
    %101 = vsyncpa [#allocation3], 1
    %102 = vsyncpa [#allocation6], 1
    %103 = vsyncpa [#allocation4], 1

</llo_original>
